<compile_context>
chip_gen: v7x
topology: tpu7x:2x2x1
jax: 0.10.0
libtpu: 0.0.40
codegen_flags: <defaults>
</compile_context>

<pallas_src>
import functools

import numpy as np

import jax
import jax.numpy as jnp
from jax.experimental import pallas as pl
from jax.experimental.pallas import tpu as pltpu


def _yolo_kernel(p_ref, g_ref, io_ref, *, anchors, stride):
    """Channel-leading YOLO head transform.

    p_ref / io_ref : (b_tile, na, no, s_tile) float32   (lane axis = spatial)
    g_ref          : (1, 1, 2, s_tile) float32          (row 0 = x grid, row 1 = y grid)
    anchors        : numpy (na, 2) compile-time constants (already *stride folded:
                     anchor_vec * stride == anchors)
    """
    stride_f = jnp.float32(stride)
    gx = g_ref[:, :, 0:1, :]        # (1, 1, 1, s_tile), broadcasts over (b_tile, na)
    gy = g_ref[:, :, 1:2, :]

    # channels 0,1: (sigmoid(x) + grid) * stride     -- lane-dense slices
    io_ref[:, :, 0:1, :] = (jax.nn.sigmoid(p_ref[:, :, 0:1, :]) + gx) * stride_f
    io_ref[:, :, 1:2, :] = (jax.nn.sigmoid(p_ref[:, :, 1:2, :]) + gy) * stride_f

    # channels 2,3: exp(x) * anchor   (anchor_vec/stride math folded statically)
    na = anchors.shape[0]
    for a in range(na):                               # static unroll, na is tiny
        aw = float(anchors[a, 0])
        ah = float(anchors[a, 1])
        io_ref[:, a:a + 1, 2:3, :] = jnp.exp(p_ref[:, a:a + 1, 2:3, :]) * aw
        io_ref[:, a:a + 1, 3:4, :] = jnp.exp(p_ref[:, a:a + 1, 3:4, :]) * ah

    # channels 4..no-1: objectness + class scores, plain sigmoid
    io_ref[:, :, 4:, :] = jax.nn.sigmoid(p_ref[:, :, 4:, :])


def _choose_tiles(bs, na, no, S, target_bytes=2 << 20):
    """Pick (b_tile, s_tile) giving ~1-4 MiB blocks within v7x VMEM budget."""
    # Spatial tile: full S, or a 128-multiple divisor keeping blocks <= target.
    s_tile = S
    if S % 128 == 0:
        while na * no * s_tile * 4 > target_bytes and s_tile % 256 == 0:
            s_tile //= 2
    # Batch tile: only grow when a whole-batch slab is small and spatial is
    # untiled; keep >= 2 grid steps so both v7x TensorCores get work.
    b_tile = 1
    if s_tile == S:
        while (bs % (2 * b_tile) == 0
               and 2 * b_tile * na * no * S * 4 <= target_bytes
               and bs // (2 * b_tile) >= 2):
            b_tile *= 2
    return b_tile, s_tile


def yolo_layer_forward(p_nchw, anchors, nc, stride):
    """Inference forward of YOLOLayer.

    Args:
      p_nchw: (bs, na*no, ny, nx) float32
      anchors: (na, 2) array-like (static module config)
      nc: number of classes
      stride: python int/float
    Returns:
      (io_flat, p_perm) with shapes (bs, na*ny*nx, no) and (bs, na, ny, nx, no)
    """
    anchors = np.asarray(anchors, dtype=np.float32)   # compile-time constants
    na = anchors.shape[0]
    no = nc + 5
    bs, c, ny, nx = p_nchw.shape
    assert c == na * no
    S = ny * nx

    # Free reshape (memory order preserved): channel-leading view for the kernel.
    p_r = p_nchw.astype(jnp.float32).reshape(bs, na, no, S)

    # Precomputed cell grid, channel-leading: (1, 1, 2, S); row 0 = x, row 1 = y.
    yv, xv = jnp.meshgrid(jnp.arange(ny, dtype=jnp.float32),
                          jnp.arange(nx, dtype=jnp.float32), indexing="ij")
    gxy = jnp.stack([xv.reshape(-1), yv.reshape(-1)], axis=0).reshape(1, 1, 2, S)

    b_tile, s_tile = _choose_tiles(bs, na, no, S)

    kernel = functools.partial(_yolo_kernel, anchors=anchors, stride=float(stride))

    io_ch = pl.pallas_call(
        kernel,
        out_shape=jax.ShapeDtypeStruct((bs, na, no, S), jnp.float32),
        grid_spec=pltpu.PrefetchScalarGridSpec(
            num_scalar_prefetch=0,
            grid=(bs // b_tile, S // s_tile),
            in_specs=[
                pl.BlockSpec((b_tile, na, no, s_tile), lambda b, s: (b, 0, 0, s)),
                pl.BlockSpec((1, 1, 2, s_tile), lambda b, s: (0, 0, 0, s)),
            ],
            out_specs=pl.BlockSpec((b_tile, na, no, s_tile),
                                   lambda b, s: (b, 0, 0, s)),
        ),
        compiler_params=pltpu.CompilerParams(
            dimension_semantics=("parallel", "parallel")),
    )(p_r, gxy)

    # Materialize the permuted (channels-last) layouts exactly once each.
    p_perm = jnp.transpose(p_r.reshape(bs, na, no, ny, nx), (0, 1, 3, 4, 2))
    io_perm = jnp.transpose(io_ch.reshape(bs, na, no, ny, nx), (0, 1, 3, 4, 2))
    io_flat = io_perm.reshape(bs, na * S, no)
    return io_flat, p_perm


def _reference_forward(p_nchw, anchors, nc, stride):
    """Pure-JAX reference mirroring the PyTorch inference path."""
    anchors = jnp.asarray(np.asarray(anchors, dtype=np.float32))
    na = anchors.shape[0]
    no = nc + 5
    bs, _, ny, nx = p_nchw.shape
    p = jnp.transpose(p_nchw.reshape(bs, na, no, ny, nx), (0, 1, 3, 4, 2))
    yv, xv = jnp.meshgrid(jnp.arange(ny), jnp.arange(nx), indexing="ij")
    grid = jnp.stack((xv, yv), 2).reshape(1, 1, ny, nx, 2).astype(jnp.float32)
    anchor_wh = (anchors / stride).reshape(1, na, 1, 1, 2)
    xy = (jax.nn.sigmoid(p[..., :2]) + grid) * stride
    wh = jnp.exp(p[..., 2:4]) * anchor_wh * stride
    rest = jax.nn.sigmoid(p[..., 4:])
    io = jnp.concatenate([xy, wh, rest], axis=-1)
    return io.reshape(bs, -1, no), p


if __name__ == "__main__":
    # Small, deterministic configuration.
    nc = 4                      # number of classes  -> no = 9
    na = 3                      # number of anchors
    stride = 32
    anchors = [[10.0, 13.0], [16.0, 30.0], [33.0, 23.0]]
    bs, ny, nx = 2, 16, 16
    no = nc + 5

    key = jax.random.PRNGKey(0)
    p_in = jax.random.normal(key, (bs, na * no, ny, nx), dtype=jnp.float32)

    io_flat, p_perm = yolo_layer_forward(p_in, anchors, nc, stride)
    io_flat = jax.block_until_ready(io_flat)
    p_perm = jax.block_until_ready(p_perm)

    # Verify against pure-JAX reference of the PyTorch forward.
    io_ref, p_ref = _reference_forward(p_in, anchors, nc, stride)
    assert io_flat.shape == (bs, na * ny * nx, no)
    assert p_perm.shape == (bs, na, ny, nx, no)
    assert jnp.allclose(io_flat, io_ref, atol=1e-4, rtol=1e-4)
    assert jnp.allclose(p_perm, p_ref, atol=1e-6, rtol=1e-6)

    print("KERNEL_OK")
</pallas_src>

<mosaic_0001>
module attributes {stable_mosaic.version = 11 : i64} {
  func.func @_yolo_kernel(%arg0: i32, %arg1: i32, %arg2: memref<1x3x9x256xf32, #tpu.memory_space<vmem>>, %arg3: memref<1x1x2x256xf32, #tpu.memory_space<vmem>>, %arg4: memref<1x3x9x256xf32, #tpu.memory_space<vmem>>) attributes {dimension_semantics = [#tpu.dimension_semantics<parallel>, #tpu.dimension_semantics<parallel>], iteration_bounds = array<i64: 2, 1>, scalar_prefetch = 0 : i64, scratch_operands = 0 : i64, tpu.core_type = #tpu.core_type<tc>, window_params = [{transform_indices = @transform_0, window_bounds = array<i64: 1, 3, 9, 256>}, {transform_indices = @transform_1, window_bounds = array<i64: 1, 1, 2, 256>}, {transform_indices = @transform_2, window_bounds = array<i64: 1, 3, 9, 256>}]} {
    %c0 = arith.constant 0 : index
    %c0_0 = arith.constant 0 : index
    %c0_1 = arith.constant 0 : index
    %c0_2 = arith.constant 0 : index
    %0 = vector.load %arg3[%c0, %c0_0, %c0_1, %c0_2] : memref<1x1x2x256xf32, #tpu.memory_space<vmem>>, vector<1x1x1x256xf32>
    %c0_3 = arith.constant 0 : index
    %c0_4 = arith.constant 0 : index
    %c1 = arith.constant 1 : index
    %c0_5 = arith.constant 0 : index
    %1 = vector.load %arg3[%c0_3, %c0_4, %c1, %c0_5] : memref<1x1x2x256xf32, #tpu.memory_space<vmem>>, vector<1x1x1x256xf32>
    %c0_6 = arith.constant 0 : index
    %c0_7 = arith.constant 0 : index
    %c0_8 = arith.constant 0 : index
    %c0_9 = arith.constant 0 : index
    %2 = vector.load %arg2[%c0_6, %c0_7, %c0_8, %c0_9] : memref<1x3x9x256xf32, #tpu.memory_space<vmem>>, vector<1x3x1x256xf32>
    %3 = arith.negf %2 : vector<1x3x1x256xf32>
    %4 = math.exp %3 : vector<1x3x1x256xf32>
    %cst = arith.constant 1.000000e+00 : f32
    %5 = vector.broadcast %cst : f32 to vector<1x3x1x256xf32>
    %6 = arith.addf %5, %4 : vector<1x3x1x256xf32>
    %7 = arith.divf %5, %6 : vector<1x3x1x256xf32>
    %8 = vector.broadcast %0 : vector<1x1x1x256xf32> to vector<1x3x1x256xf32>
    %9 = arith.addf %7, %8 : vector<1x3x1x256xf32>
    %cst_10 = arith.constant 3.200000e+01 : f32
    %10 = vector.broadcast %cst_10 : f32 to vector<1x3x1x256xf32>
    %11 = arith.mulf %9, %10 : vector<1x3x1x256xf32>
    %c0_11 = arith.constant 0 : index
    %c0_12 = arith.constant 0 : index
    %c0_13 = arith.constant 0 : index
    %c0_14 = arith.constant 0 : index
    %12 = vector.load %arg4[%c0_11, %c0_12, %c0_13, %c0_14] : memref<1x3x9x256xf32, #tpu.memory_space<vmem>>, vector<1x3x1x256xf32>
    tpu.vector_store %arg4[%c0_11, %c0_12, %c0_13, %c0_14], %11 {strides = array<i32>} : memref<1x3x9x256xf32, #tpu.memory_space<vmem>>, vector<1x3x1x256xf32>,
    %c0_15 = arith.constant 0 : index
    %c0_16 = arith.constant 0 : index
    %c1_17 = arith.constant 1 : index
    %c0_18 = arith.constant 0 : index
    %13 = vector.load %arg2[%c0_15, %c0_16, %c1_17, %c0_18] : memref<1x3x9x256xf32, #tpu.memory_space<vmem>>, vector<1x3x1x256xf32>
    %14 = arith.negf %13 : vector<1x3x1x256xf32>
    %15 = math.exp %14 : vector<1x3x1x256xf32>
    %cst_19 = arith.constant 1.000000e+00 : f32
    %16 = vector.broadcast %cst_19 : f32 to vector<1x3x1x256xf32>
    %17 = arith.addf %16, %15 : vector<1x3x1x256xf32>
    %18 = arith.divf %16, %17 : vector<1x3x1x256xf32>
    %19 = vector.broadcast %1 : vector<1x1x1x256xf32> to vector<1x3x1x256xf32>
    %20 = arith.addf %18, %19 : vector<1x3x1x256xf32>
    %cst_20 = arith.constant 3.200000e+01 : f32
    %21 = vector.broadcast %cst_20 : f32 to vector<1x3x1x256xf32>
    %22 = arith.mulf %20, %21 : vector<1x3x1x256xf32>
    %c0_21 = arith.constant 0 : index
    %c0_22 = arith.constant 0 : index
    %c1_23 = arith.constant 1 : index
    %c0_24 = arith.constant 0 : index
    %23 = vector.load %arg4[%c0_21, %c0_22, %c1_23, %c0_24] : memref<1x3x9x256xf32, #tpu.memory_space<vmem>>, vector<1x3x1x256xf32>
    tpu.vector_store %arg4[%c0_21, %c0_22, %c1_23, %c0_24], %22 {strides = array<i32>} : memref<1x3x9x256xf32, #tpu.memory_space<vmem>>, vector<1x3x1x256xf32>,
    %c0_25 = arith.constant 0 : index
    %c0_26 = arith.constant 0 : index
    %c2 = arith.constant 2 : index
    %c0_27 = arith.constant 0 : index
    %24 = vector.load %arg2[%c0_25, %c0_26, %c2, %c0_27] : memref<1x3x9x256xf32, #tpu.memory_space<vmem>>, vector<1x1x1x256xf32>
    %25 = math.exp %24 : vector<1x1x1x256xf32>
    %cst_28 = arith.constant 1.000000e+01 : f32
    %26 = vector.broadcast %cst_28 : f32 to vector<1x1x1x256xf32>
    %27 = arith.mulf %25, %26 : vector<1x1x1x256xf32>
    %c0_29 = arith.constant 0 : index
    %c0_30 = arith.constant 0 : index
    %c2_31 = arith.constant 2 : index
    %c0_32 = arith.constant 0 : index
    %28 = vector.load %arg4[%c0_29, %c0_30, %c2_31, %c0_32] : memref<1x3x9x256xf32, #tpu.memory_space<vmem>>, vector<1x1x1x256xf32>
    tpu.vector_store %arg4[%c0_29, %c0_30, %c2_31, %c0_32], %27 {strides = array<i32>} : memref<1x3x9x256xf32, #tpu.memory_space<vmem>>, vector<1x1x1x256xf32>,
    %c0_33 = arith.constant 0 : index
    %c0_34 = arith.constant 0 : index
    %c3 = arith.constant 3 : index
    %c0_35 = arith.constant 0 : index
    %29 = vector.load %arg2[%c0_33, %c0_34, %c3, %c0_35] : memref<1x3x9x256xf32, #tpu.memory_space<vmem>>, vector<1x1x1x256xf32>
    %30 = math.exp %29 : vector<1x1x1x256xf32>
    %cst_36 = arith.constant 1.300000e+01 : f32
    %31 = vector.broadcast %cst_36 : f32 to vector<1x1x1x256xf32>
    %32 = arith.mulf %30, %31 : vector<1x1x1x256xf32>
    %c0_37 = arith.constant 0 : index
    %c0_38 = arith.constant 0 : index
    %c3_39 = arith.constant 3 : index
    %c0_40 = arith.constant 0 : index
    %33 = vector.load %arg4[%c0_37, %c0_38, %c3_39, %c0_40] : memref<1x3x9x256xf32, #tpu.memory_space<vmem>>, vector<1x1x1x256xf32>
    tpu.vector_store %arg4[%c0_37, %c0_38, %c3_39, %c0_40], %32 {strides = array<i32>} : memref<1x3x9x256xf32, #tpu.memory_space<vmem>>, vector<1x1x1x256xf32>,
    %c0_41 = arith.constant 0 : index
    %c1_42 = arith.constant 1 : index
    %c2_43 = arith.constant 2 : index
    %c0_44 = arith.constant 0 : index
    %34 = vector.load %arg2[%c0_41, %c1_42, %c2_43, %c0_44] : memref<1x3x9x256xf32, #tpu.memory_space<vmem>>, vector<1x1x1x256xf32>
    %35 = math.exp %34 : vector<1x1x1x256xf32>
    %cst_45 = arith.constant 1.600000e+01 : f32
    %36 = vector.broadcast %cst_45 : f32 to vector<1x1x1x256xf32>
    %37 = arith.mulf %35, %36 : vector<1x1x1x256xf32>
    %c0_46 = arith.constant 0 : index
    %c1_47 = arith.constant 1 : index
    %c2_48 = arith.constant 2 : index
    %c0_49 = arith.constant 0 : index
    %38 = vector.load %arg4[%c0_46, %c1_47, %c2_48, %c0_49] : memref<1x3x9x256xf32, #tpu.memory_space<vmem>>, vector<1x1x1x256xf32>
    tpu.vector_store %arg4[%c0_46, %c1_47, %c2_48, %c0_49], %37 {strides = array<i32>} : memref<1x3x9x256xf32, #tpu.memory_space<vmem>>, vector<1x1x1x256xf32>,
    %c0_50 = arith.constant 0 : index
    %c1_51 = arith.constant 1 : index
    %c3_52 = arith.constant 3 : index
    %c0_53 = arith.constant 0 : index
    %39 = vector.load %arg2[%c0_50, %c1_51, %c3_52, %c0_53] : memref<1x3x9x256xf32, #tpu.memory_space<vmem>>, vector<1x1x1x256xf32>
    %40 = math.exp %39 : vector<1x1x1x256xf32>
    %cst_54 = arith.constant 3.000000e+01 : f32
    %41 = vector.broadcast %cst_54 : f32 to vector<1x1x1x256xf32>
    %42 = arith.mulf %40, %41 : vector<1x1x1x256xf32>
    %c0_55 = arith.constant 0 : index
    %c1_56 = arith.constant 1 : index
    %c3_57 = arith.constant 3 : index
    %c0_58 = arith.constant 0 : index
    %43 = vector.load %arg4[%c0_55, %c1_56, %c3_57, %c0_58] : memref<1x3x9x256xf32, #tpu.memory_space<vmem>>, vector<1x1x1x256xf32>
    tpu.vector_store %arg4[%c0_55, %c1_56, %c3_57, %c0_58], %42 {strides = array<i32>} : memref<1x3x9x256xf32, #tpu.memory_space<vmem>>, vector<1x1x1x256xf32>,
    %c0_59 = arith.constant 0 : index
    %c2_60 = arith.constant 2 : index
    %c2_61 = arith.constant 2 : index
    %c0_62 = arith.constant 0 : index
    %44 = vector.load %arg2[%c0_59, %c2_60, %c2_61, %c0_62] : memref<1x3x9x256xf32, #tpu.memory_space<vmem>>, vector<1x1x1x256xf32>
    %45 = math.exp %44 : vector<1x1x1x256xf32>
    %cst_63 = arith.constant 3.300000e+01 : f32
    %46 = vector.broadcast %cst_63 : f32 to vector<1x1x1x256xf32>
    %47 = arith.mulf %45, %46 : vector<1x1x1x256xf32>
    %c0_64 = arith.constant 0 : index
    %c2_65 = arith.constant 2 : index
    %c2_66 = arith.constant 2 : index
    %c0_67 = arith.constant 0 : index
    %48 = vector.load %arg4[%c0_64, %c2_65, %c2_66, %c0_67] : memref<1x3x9x256xf32, #tpu.memory_space<vmem>>, vector<1x1x1x256xf32>
    tpu.vector_store %arg4[%c0_64, %c2_65, %c2_66, %c0_67], %47 {strides = array<i32>} : memref<1x3x9x256xf32, #tpu.memory_space<vmem>>, vector<1x1x1x256xf32>,
    %c0_68 = arith.constant 0 : index
    %c2_69 = arith.constant 2 : index
    %c3_70 = arith.constant 3 : index
    %c0_71 = arith.constant 0 : index
    %49 = vector.load %arg2[%c0_68, %c2_69, %c3_70, %c0_71] : memref<1x3x9x256xf32, #tpu.memory_space<vmem>>, vector<1x1x1x256xf32>
    %50 = math.exp %49 : vector<1x1x1x256xf32>
    %cst_72 = arith.constant 2.300000e+01 : f32
    %51 = vector.broadcast %cst_72 : f32 to vector<1x1x1x256xf32>
    %52 = arith.mulf %50, %51 : vector<1x1x1x256xf32>
    %c0_73 = arith.constant 0 : index
    %c2_74 = arith.constant 2 : index
    %c3_75 = arith.constant 3 : index
    %c0_76 = arith.constant 0 : index
    %53 = vector.load %arg4[%c0_73, %c2_74, %c3_75, %c0_76] : memref<1x3x9x256xf32, #tpu.memory_space<vmem>>, vector<1x1x1x256xf32>
    tpu.vector_store %arg4[%c0_73, %c2_74, %c3_75, %c0_76], %52 {strides = array<i32>} : memref<1x3x9x256xf32, #tpu.memory_space<vmem>>, vector<1x1x1x256xf32>,
    %c0_77 = arith.constant 0 : index
    %c0_78 = arith.constant 0 : index
    %c4 = arith.constant 4 : index
    %c0_79 = arith.constant 0 : index
    %54 = vector.load %arg2[%c0_77, %c0_78, %c4, %c0_79] : memref<1x3x9x256xf32, #tpu.memory_space<vmem>>, vector<1x3x5x256xf32>
    %55 = arith.negf %54 : vector<1x3x5x256xf32>
    %56 = math.exp %55 : vector<1x3x5x256xf32>
    %cst_80 = arith.constant 1.000000e+00 : f32
    %57 = vector.broadcast %cst_80 : f32 to vector<1x3x5x256xf32>
    %58 = arith.addf %57, %56 : vector<1x3x5x256xf32>
    %59 = arith.divf %57, %58 : vector<1x3x5x256xf32>
    %c0_81 = arith.constant 0 : index
    %c0_82 = arith.constant 0 : index
    %c4_83 = arith.constant 4 : index
    %c0_84 = arith.constant 0 : index
    %60 = vector.load %arg4[%c0_81, %c0_82, %c4_83, %c0_84] : memref<1x3x9x256xf32, #tpu.memory_space<vmem>>, vector<1x3x5x256xf32>
    tpu.vector_store %arg4[%c0_81, %c0_82, %c4_83, %c0_84], %59 {strides = array<i32>} : memref<1x3x9x256xf32, #tpu.memory_space<vmem>>, vector<1x3x5x256xf32>,
    return
  }
  func.func @transform_0(%arg0: i32, %arg1: i32) -> (i32, i32, i32, i32) {
    %c0_i32 = arith.constant 0 : i32
    %c0_i32_0 = arith.constant 0 : i32
    %c0_i32_1 = arith.constant 0 : i32
    return %arg0, %c0_i32, %c0_i32_0, %arg1 : i32, i32, i32, i32
  }
  func.func @transform_1(%arg0: i32, %arg1: i32) -> (i32, i32, i32, i32) {
    %c0_i32 = arith.constant 0 : i32
    %c0_i32_0 = arith.constant 0 : i32
    %c0_i32_1 = arith.constant 0 : i32
    %c0_i32_2 = arith.constant 0 : i32
    return %c0_i32, %c0_i32_0, %c0_i32_1, %arg1 : i32, i32, i32, i32
  }
  func.func @transform_2(%arg0: i32, %arg1: i32) -> (i32, i32, i32, i32) {
    %c0_i32 = arith.constant 0 : i32
    %c0_i32_0 = arith.constant 0 : i32
    %c0_i32_1 = arith.constant 0 : i32
    return %arg0, %c0_i32, %c0_i32_0, %arg1 : i32, i32, i32, i32
  }
}

</mosaic_0001>

<llo_original>
// kernel: tpu_custom_call.1
$region0: #{tpu_custom_call.1}
  #allocation0 [shape = 'u32[]', space=smem, size = 0x4, offset = 0x4, fixed_abs, tag = 'smem constant byte address 0x4 - core index']
  #allocation1 [shape = 'u32[144,128]{1,0:T(1,128)}', space=vmem, size = 0x12000, scoped, tag = 'internal scratch']
  %s0 = inlined_call_operand.vmem [shape: f32[2,3,9,256], index: 0, kind: input, shape index: {}]
  %s1 = inlined_call_operand.vmem [shape: f32[1,1,2,256], index: 1, kind: input, shape index: {}]
  %s2 = inlined_call_operand.vmem [shape: f32[2,3,9,256], index: 2, kind: output, shape index: {}]
  %s3 = sld [smem:[#allocation0]]
  $region41: #{tpu_custom_call.1} parent=0
    _
  %s5 = ssub.s32 1, %s3
  %s6 = scalar_select 0, %s5, %s3
  loop: start=0, step=1, limit=4
  $region2: #{tpu_custom_call.1} parent=0 // loop_pre_header
    _
  $region3: #{tpu_custom_call.1} parent=0 // loop_header
    %s8 = sphi 0, %s12
    %p9 = scmp.ge.s32.totalorder %s8, 4
    %s15 = sphi 0, %s27
    %s16 = sphi 0, %s23
    %s17 = sphi 0, %s15
    %s18 = sphi 0, %s16
    %s19 = sphi 0, %s17
    %s20 = sphi 0, %s18
    %s32 = sphi 0, %s34
    %s35 = sphi 0, %s32
    %s36 = sphi 0, %s35
    %s52 = sphi 0, %s36
    %s58 = sphi 0, %s60
    %s61 = sphi 0, %s58
    %s62 = sphi 0, %s61
    %s78 = sphi 0, %s62
    %s86 = sphi 0, %s88
    %s89 = sphi 0, %s86
    %s90 = sphi 0, %s89
    %s106 = sphi 0, %s90
  $region4: #{tpu_custom_call.1} parent=0 // loop_header_branch
    %11 = sbr.rel (%p9) target = $region8
  $region5: #{tpu_custom_call.1} parent=0 // loop_body
    %s13 = ssub.s32 %s8, 1
    %s14 = ssub.s32 %s8, 2
    %s21 = sadd.s32 1, %s16
    %p22 = scmp.ge.s32.totalorder %s21, 1
    %s23 = scalar_select %p22, 0, %s21
    %s24 = sadd.s32 1, %s15
    %s25 = scalar_select %p22, %s24, %s15
    %p26 = scmp.ge.s32.totalorder %s25, 2
    %s27 = scalar_select %p26, 0, %s25
    %s28 = ssub.s32 %s15, %s27
    %s29 = ssub.s32 %s16, %s23
    %s30 = sor.u32 %s28, %s29
    %p31 = scmp.eq.s32.totalorder %s30, 0
    %s33 = sadd.s32 %s32, 1
    %s34 = scalar_select %p31, %s32, %s33
    %p37 = pneg %p31
    %p38 = scmp.eq.s32.totalorder %s8, 1
    %p39 = por %p37, %p38
    %p40 = scmp.ne.s32.totalorder %s32, %s35
    %p41 = scmp.eq.s32.totalorder %s8, 0
    %p42 = por %p40, %p41
    %p43 = scmp.ne.s32.totalorder %s32, %s35
    %p44 = scmp.eq.s32.totalorder %s13, 1
    %p45 = por %p43, %p44
    %p46 = scmp.ne.s32.totalorder %s35, %s36
    %p47 = scmp.eq.s32.totalorder %s13, 0
    %p48 = por %p46, %p47
    %p49 = scmp.ne.s32.totalorder %s35, %s36
    %p50 = scmp.eq.s32.totalorder %s14, 1
    %p51 = por %p49, %p50
    %p53 = scmp.ne.s32.totalorder %s36, %s52
    %p54 = scmp.eq.s32.totalorder %s14, 0
    %p55 = por %p53, %p54
    %s56 = ssub.s32 %s16, %s23
    %p57 = scmp.eq.s32.totalorder %s56, 0
    %s59 = sadd.s32 %s58, 1
    %s60 = scalar_select %p57, %s58, %s59
    %p63 = pneg %p57
    %p64 = scmp.eq.s32.totalorder %s8, 1
    %p65 = por %p63, %p64
    %p66 = scmp.ne.s32.totalorder %s58, %s61
    %p67 = scmp.eq.s32.totalorder %s8, 0
    %p68 = por %p66, %p67
    %p69 = scmp.ne.s32.totalorder %s58, %s61
    %p70 = scmp.eq.s32.totalorder %s13, 1
    %p71 = por %p69, %p70
    %p72 = scmp.ne.s32.totalorder %s61, %s62
    %p73 = scmp.eq.s32.totalorder %s13, 0
    %p74 = por %p72, %p73
    %p75 = scmp.ne.s32.totalorder %s61, %s62
    %p76 = scmp.eq.s32.totalorder %s14, 1
    %p77 = por %p75, %p76
    %p79 = scmp.ne.s32.totalorder %s62, %s78
    %p80 = scmp.eq.s32.totalorder %s14, 0
    %p81 = por %p79, %p80
    %s82 = ssub.s32 %s15, %s27
    %s83 = ssub.s32 %s16, %s23
    %s84 = sor.u32 %s82, %s83
    %p85 = scmp.eq.s32.totalorder %s84, 0
    %s87 = sadd.s32 %s86, 1
    %s88 = scalar_select %p85, %s86, %s87
    %p91 = pneg %p85
    %p92 = scmp.eq.s32.totalorder %s8, 1
    %p93 = por %p91, %p92
    %p94 = scmp.ne.s32.totalorder %s86, %s89
    %p95 = scmp.eq.s32.totalorder %s8, 0
    %p96 = por %p94, %p95
    %p97 = scmp.ne.s32.totalorder %s86, %s89
    %p98 = scmp.eq.s32.totalorder %s13, 1
    %p99 = por %p97, %p98
    %p100 = scmp.ne.s32.totalorder %s89, %s90
    %p101 = scmp.eq.s32.totalorder %s13, 0
    %p102 = por %p100, %p101
    %p103 = scmp.ne.s32.totalorder %s89, %s90
    %p104 = scmp.eq.s32.totalorder %s14, 1
    %p105 = por %p103, %p104
    %p107 = scmp.ne.s32.totalorder %s90, %s106
    %p108 = scmp.eq.s32.totalorder %s14, 0
    %p109 = por %p107, %p108
    %p110 = scmp.le.s32.totalorder 1, %s8
    %p111 = scmp.lt.s32.totalorder %s8, 3
    %p112 = pnand %p110, %p111
    %p113 = pneg %p112
    // Predicated region
    $region9: #{tpu_custom_call.1} parent=5 // pred_check
      _
    $region10: #{tpu_custom_call.1} parent=5 // pred_check_branch
      %115 = sbr.rel (%p112) target = $region12
    $region11: #{tpu_custom_call.1} parent=5 // pred_region
      %s116 = ssub.s32 %s8, 1
      // Predicated region
      $region13: #{tpu_custom_call.1} parent=11 // pred_check
        %p117 = pneg %p74
      $region14: #{tpu_custom_call.1} parent=11 // pred_check_branch
        %119 = sbr.rel (%p117) target = $region16
      $region15: #{tpu_custom_call.1} parent=11 // pred_region
        %s120 = smul.u32 2, %s18
        %p121 = scmp.lt.s32.totalorder %s120, 1
        %s122 = scalar_select %p121, %s120, 1
        %s123 = smul.addr %s122, 2
        %s124 = scalar_lea.vmem %s1, %s123
        %s125 = smul.u32 2, %s18
      $region16: #{tpu_custom_call.1} parent=11 // pred_fallthru
        _
    $region12: #{tpu_custom_call.1} parent=5 // pred_fallthru
      _
    %p126 = scmp.lt.s32.totalorder %s8, 2
    // Predicated region
    $region17: #{tpu_custom_call.1} parent=5 // pred_check
      %p127 = pneg %p126
    $region18: #{tpu_custom_call.1} parent=5 // pred_check_branch
      %129 = sbr.rel (%p127) target = $region20
    $region19: #{tpu_custom_call.1} parent=5 // pred_region
      // Predicated region
      $region21: #{tpu_custom_call.1} parent=19 // pred_check
        %p130 = pneg %p42
      $region22: #{tpu_custom_call.1} parent=19 // pred_check_branch
        %132 = sbr.rel (%p130) target = $region24
      $region23: #{tpu_custom_call.1} parent=19 // pred_region
        %s133 = smul.u32 2, %s16
        %p134 = scmp.lt.s32.totalorder %s15, 1
        %s135 = scalar_select %p134, %s15, 1
        %p136 = scmp.lt.s32.totalorder %s133, 1
        %s137 = scalar_select %p136, %s133, 1
        %s138 = smul.addr %s135, 12
        %s139 = sadd.s32 %s137, %s138
        %s140 = smul.addr %s139, 8
        %s141 = scalar_lea.vmem %s0, %s140
        %s142 = smul.u32 2, %s16
      $region24: #{tpu_custom_call.1} parent=19 // pred_fallthru
        _
    $region20: #{tpu_custom_call.1} parent=5 // pred_fallthru
      _
    %p143 = scmp.le.s32.totalorder 1, %s8
    %p144 = scmp.lt.s32.totalorder %s8, 3
    %p145 = pnand %p143, %p144
    %p146 = pneg %p145
    // Predicated region
    $region25: #{tpu_custom_call.1} parent=5 // pred_check
      _
    $region26: #{tpu_custom_call.1} parent=5 // pred_check_branch
      %148 = sbr.rel (%p145) target = $region28
    $region27: #{tpu_custom_call.1} parent=5 // pred_region
      %s149 = ssub.s32 %s8, 1
      %s150 = smul.u32 2, %s18
      %p151 = scmp.lt.s32.totalorder %s17, 1
      %s152 = scalar_select %p151, %s17, 1
      %p153 = scmp.lt.s32.totalorder %s150, 1
      %s154 = scalar_select %p153, %s150, 1
      %s155 = smul.addr %s152, 12
      %s156 = sadd.s32 %s154, %s155
      %s157 = smul.addr %s156, 8
      %s158 = scalar_lea.vmem %s0, %s157
      %p159 = pneg %p48
      %p160 = pneg %p45
      %s161 = smul.u32 2, %s18
      %p162 = scmp.lt.s32.totalorder %s161, 1
      %s163 = scalar_select %p162, %s161, 1
      %s164 = smul.addr %s163, 2
      %s165 = scalar_lea.vmem %s1, %s164
      %p166 = pneg %p74
      %p167 = pneg %p71
      %p168 = pneg %p102
      %p169 = pneg %p99
      %s170 = smul.u32 2, %s18
      %p171 = scmp.lt.s32.totalorder %s17, 1
      %s172 = scalar_select %p171, %s17, 1
      %p173 = scmp.lt.s32.totalorder %s170, 1
      %s174 = scalar_select %p173, %s170, 1
      %s175 = smul.addr %s172, 12
      %s176 = sadd.s32 %s174, %s175
      %s177 = smul.addr %s176, 8
      %s178 = scalar_lea.vmem %s2, %s177
      %s179 = smul.u32 2, %s18
      %p180 = scmp.lt.s32.totalorder %s17, 1
      %s181 = scalar_select %p180, %s17, 1
      %p182 = scmp.lt.s32.totalorder %s179, 1
      %s183 = scalar_select %p182, %s179, 1
      %s184 = smul.addr %s181, 12
      %s185 = sadd.s32 %s183, %s184
      %s186 = smul.addr %s185, 8
      %s187 = scalar_lea.vmem %s0, %s186
      %s188 = smul.u32 2, %s18
      %s189 = smul.u32 2, %s18
      %p190 = scmp.lt.s32.totalorder %s189, 1
      %s191 = scalar_select %p190, %s189, 1
      %s192 = smul.addr %s191, 2
      %s193 = scalar_lea.vmem %s1, %s192
      %s194 = smul.u32 2, %s18
      %s195 = smul.u32 2, %s18
      %p196 = scmp.lt.s32.totalorder %s17, 1
      %s197 = scalar_select %p196, %s17, 1
      %p198 = scmp.lt.s32.totalorder %s195, 1
      %s199 = scalar_select %p198, %s195, 1
      %s200 = smul.addr %s197, 12
      %s201 = sadd.s32 %s199, %s200
      %s202 = smul.addr %s201, 8
      %s203 = scalar_lea.vmem %s2, %s202
      %s204 = smul.u32 2, %s18
      %v205 = vld [vmem:[%s193] ss:$2 sm:$0x3]
      %s206 = scalar_lea.vmem %s193, 1
      %v207 = vld [vmem:[%s206] ss:$2 sm:$0x3]
      %v208 = vld [vmem:[%s187] ss:$8 sm:$0x3]
      %s209 = scalar_lea.vmem %s187, 32
      %v210 = vld [vmem:[%s209] ss:$8 sm:$0x3]
      %s211 = scalar_lea.vmem %s187, 64
      %v212 = vld [vmem:[%s211] ss:$8 sm:$0x3]
      %v213 = vxor.u32 %v208, 2147483648
      %v214 = vxor.u32 %v210, 2147483648
      %v215 = vxor.u32 %v212, 2147483648
      %v216 = vmul.f32 %v213, 1.442695
      %v217 = vpow.pop %v216
      %v218 = vmul.f32 %v214, 1.442695
      %v219 = vpow.pop %v218
      %v220 = vmul.f32 %v215, 1.442695
      %v221 = vpow.pop %v220
      %v222 = vadd.f32 %v217, 1.0
      %v223 = vadd.f32 %v219, 1.0
      %v224 = vadd.f32 %v221, 1.0
      %v225 = vrcp.pop %v222
      %v226 = vmul.f32 1.0, %v225
      %v227 = vrcp.pop %v223
      %v228 = vmul.f32 1.0, %v227
      %v229 = vrcp.pop %v224
      %v230 = vmul.f32 1.0, %v229
      %v231 = vadd.f32 %v226, %v205
      %v232 = vadd.f32 %v228, %v205
      %v233 = vadd.f32 %v230, %v205
      %v234 = vmul.f32 %v231, 32.0
      %v235 = vmul.f32 %v232, 32.0
      %v236 = vmul.f32 %v233, 32.0
      %v237 = vlaneseq
      %vm238 = vcmp.ge.s32.totalorder %v237, 0
      %vm239 = vcmp.lt.s32.totalorder %v237, 256
      %vm240 = vmand %vm238, %vm239
      %241 = vst.msk [vmem:[%s203] ss:$8 sm:$0x3] %vm240, %v234
      %242 = vst.msk [vmem:[%s203] ss:$8 sm:$0x0] %vm240, %v234
      %s243 = scalar_lea.vmem %s203, 32
      %244 = vst.msk [vmem:[%s243] ss:$8 sm:$0x3] %vm240, %v235
      %245 = vst.msk [vmem:[%s243] ss:$8 sm:$0x0] %vm240, %v235
      %s246 = scalar_lea.vmem %s203, 64
      %247 = vst.msk [vmem:[%s246] ss:$8 sm:$0x3] %vm240, %v236
      %248 = vst.msk [vmem:[%s246] ss:$8 sm:$0x0] %vm240, %v236
      %s249 = scalar_lea.vmem %s187, 1
      %v250 = vld [vmem:[%s249] ss:$8 sm:$0x3]
      %s251 = scalar_lea.vmem %s187, 33
      %v252 = vld [vmem:[%s251] ss:$8 sm:$0x3]
      %s253 = scalar_lea.vmem %s187, 65
      %v254 = vld [vmem:[%s253] ss:$8 sm:$0x3]
      %v255 = vxor.u32 %v250, 2147483648
      %v256 = vxor.u32 %v252, 2147483648
      %v257 = vxor.u32 %v254, 2147483648
      %v258 = vmul.f32 %v255, 1.442695
      %v259 = vpow.pop %v258
      %v260 = vmul.f32 %v256, 1.442695
      %v261 = vpow.pop %v260
      %v262 = vmul.f32 %v257, 1.442695
      %v263 = vpow.pop %v262
      %v264 = vadd.f32 %v259, 1.0
      %v265 = vadd.f32 %v261, 1.0
      %v266 = vadd.f32 %v263, 1.0
      %v267 = vrcp.pop %v264
      %v268 = vmul.f32 1.0, %v267
      %v269 = vrcp.pop %v265
      %v270 = vmul.f32 1.0, %v269
      %v271 = vrcp.pop %v266
      %v272 = vmul.f32 1.0, %v271
      %v273 = vadd.f32 %v268, %v207
      %v274 = vadd.f32 %v270, %v207
      %v275 = vadd.f32 %v272, %v207
      %v276 = vmul.f32 %v273, 32.0
      %v277 = vmul.f32 %v274, 32.0
      %v278 = vmul.f32 %v275, 32.0
      %s279 = scalar_lea.vmem %s203, 1
      %280 = vst.msk [vmem:[%s279] ss:$8 sm:$0x3] %vm240, %v276
      %281 = vst.msk [vmem:[%s279] ss:$8 sm:$0x0] %vm240, %v276
      %s282 = scalar_lea.vmem %s203, 33
      %283 = vst.msk [vmem:[%s282] ss:$8 sm:$0x3] %vm240, %v277
      %284 = vst.msk [vmem:[%s282] ss:$8 sm:$0x0] %vm240, %v277
      %s285 = scalar_lea.vmem %s203, 65
      %286 = vst.msk [vmem:[%s285] ss:$8 sm:$0x3] %vm240, %v278
      %287 = vst.msk [vmem:[%s285] ss:$8 sm:$0x0] %vm240, %v278
      %s288 = scalar_lea.vmem %s187, 2
      %v289 = vld [vmem:[%s288] ss:$8 sm:$0x3]
      %v290 = vmul.f32 %v289, 1.442695
      %v291 = vpow.pop %v290
      %v292 = vmul.f32 %v291, 10.0
      %s293 = scalar_lea.vmem %s203, 2
      %294 = vst.msk [vmem:[%s293] ss:$8 sm:$0x3] %vm240, %v292
      %295 = vst.msk [vmem:[%s293] ss:$8 sm:$0x0] %vm240, %v292
      %s296 = scalar_lea.vmem %s187, 3
      %v297 = vld [vmem:[%s296] ss:$8 sm:$0x3]
      %v298 = vmul.f32 %v297, 1.442695
      %v299 = vpow.pop %v298
      %v300 = vmul.f32 %v299, 13.0
      %s301 = scalar_lea.vmem %s203, 3
      %302 = vst.msk [vmem:[%s301] ss:$8 sm:$0x3] %vm240, %v300
      %303 = vst.msk [vmem:[%s301] ss:$8 sm:$0x0] %vm240, %v300
      %s304 = scalar_lea.vmem %s187, 32
      %s305 = scalar_lea.vmem %s304, 2
      %v306 = vld [vmem:[%s305] ss:$8 sm:$0x3]
      %v307 = vmul.f32 %v306, 1.442695
      %v308 = vpow.pop %v307
      %v309 = vmul.f32 %v308, 16.0
      %s310 = scalar_lea.vmem %s203, 32
      %s311 = scalar_lea.vmem %s310, 2
      %312 = vst.msk [vmem:[%s311] ss:$8 sm:$0x3] %vm240, %v309
      %313 = vst.msk [vmem:[%s311] ss:$8 sm:$0x0] %vm240, %v309
      %s314 = scalar_lea.vmem %s304, 3
      %v315 = vld [vmem:[%s314] ss:$8 sm:$0x3]
      %v316 = vmul.f32 %v315, 1.442695
      %v317 = vpow.pop %v316
      %v318 = vmul.f32 %v317, 30.0
      %s319 = scalar_lea.vmem %s310, 3
      %320 = vst.msk [vmem:[%s319] ss:$8 sm:$0x3] %vm240, %v318
      %321 = vst.msk [vmem:[%s319] ss:$8 sm:$0x0] %vm240, %v318
      %s322 = scalar_lea.vmem %s187, 64
      %s323 = scalar_lea.vmem %s322, 2
      %v324 = vld [vmem:[%s323] ss:$8 sm:$0x3]
      %v325 = vmul.f32 %v324, 1.442695
      %v326 = vpow.pop %v325
      %v327 = vmul.f32 %v326, 33.0
      %s328 = scalar_lea.vmem %s203, 64
      %s329 = scalar_lea.vmem %s328, 2
      %330 = vst.msk [vmem:[%s329] ss:$8 sm:$0x3] %vm240, %v327
      %331 = vst.msk [vmem:[%s329] ss:$8 sm:$0x0] %vm240, %v327
      %s332 = scalar_lea.vmem %s322, 3
      %v333 = vld [vmem:[%s332] ss:$8 sm:$0x3]
      %v334 = vmul.f32 %v333, 1.442695
      %v335 = vpow.pop %v334
      %v336 = vmul.f32 %v335, 23.0
      %s337 = scalar_lea.vmem %s328, 3
      %338 = vst.msk [vmem:[%s337] ss:$8 sm:$0x3] %vm240, %v336
      %339 = vst.msk [vmem:[%s337] ss:$8 sm:$0x0] %vm240, %v336
      %v340 = vld [vmem:[%s187] sm:$0xf0]
      %v341 = vld [vmem:[%s187 + $0x8] sm:$0xf0]
      %v342 = vld [vmem:[%s187 + $0x10] sm:$0x1]
      %v343 = vld [vmem:[%s187 + $0x18] sm:$0x1]
      %v344 = vld [vmem:[%s187 + $0x20] sm:$0xf0]
      %v345 = vld [vmem:[%s187 + $0x28] sm:$0xf0]
      %v346 = vld [vmem:[%s187 + $0x30] sm:$0x1]
      %v347 = vld [vmem:[%s187 + $0x38] sm:$0x1]
      %v348 = vld [vmem:[%s187 + $0x40] sm:$0xf0]
      %v349 = vld [vmem:[%s187 + $0x48] sm:$0xf0]
      %v350 = vld [vmem:[%s187 + $0x50] sm:$0x1]
      %v351 = vld [vmem:[%s187 + $0x58] sm:$0x1]
      %v352 = vxor.u32 %v340, 2147483648
      %v353 = vxor.u32 %v341, 2147483648
      %v354 = vxor.u32 %v342, 2147483648
      %v355 = vxor.u32 %v343, 2147483648
      %v356 = vxor.u32 %v344, 2147483648
      %v357 = vxor.u32 %v345, 2147483648
      %v358 = vxor.u32 %v346, 2147483648
      %v359 = vxor.u32 %v347, 2147483648
      %v360 = vxor.u32 %v348, 2147483648
      %v361 = vxor.u32 %v349, 2147483648
      %v362 = vxor.u32 %v350, 2147483648
      %v363 = vxor.u32 %v351, 2147483648
      %v364 = vmul.f32 %v352, 1.442695
      %v365 = vpow.pop %v364
      %v366 = vmul.f32 %v353, 1.442695
      %v367 = vpow.pop %v366
      %v368 = vmul.f32 %v354, 1.442695
      %v369 = vpow.pop %v368
      %v370 = vmul.f32 %v355, 1.442695
      %v371 = vpow.pop %v370
      %v372 = vmul.f32 %v356, 1.442695
      %v373 = vpow.pop %v372
      %v374 = vmul.f32 %v357, 1.442695
      %v375 = vpow.pop %v374
      %v376 = vmul.f32 %v358, 1.442695
      %v377 = vpow.pop %v376
      %v378 = vmul.f32 %v359, 1.442695
      %v379 = vpow.pop %v378
      %v380 = vmul.f32 %v360, 1.442695
      %v381 = vpow.pop %v380
      %v382 = vmul.f32 %v361, 1.442695
      %v383 = vpow.pop %v382
      %v384 = vmul.f32 %v362, 1.442695
      %v385 = vpow.pop %v384
      %v386 = vmul.f32 %v363, 1.442695
      %v387 = vpow.pop %v386
      %v388 = vadd.f32 %v365, 1.0
      %v389 = vadd.f32 %v367, 1.0
      %v390 = vadd.f32 %v369, 1.0
      %v391 = vadd.f32 %v371, 1.0
      %v392 = vadd.f32 %v373, 1.0
      %v393 = vadd.f32 %v375, 1.0
      %v394 = vadd.f32 %v377, 1.0
      %v395 = vadd.f32 %v379, 1.0
      %v396 = vadd.f32 %v381, 1.0
      %v397 = vadd.f32 %v383, 1.0
      %v398 = vadd.f32 %v385, 1.0
      %v399 = vadd.f32 %v387, 1.0
      %v400 = vrcp.pop %v388
      %v401 = vmul.f32 1.0, %v400
      %v402 = vrcp.pop %v389
      %v403 = vmul.f32 1.0, %v402
      %v404 = vrcp.pop %v390
      %v405 = vmul.f32 1.0, %v404
      %v406 = vrcp.pop %v391
      %v407 = vmul.f32 1.0, %v406
      %v408 = vrcp.pop %v392
      %v409 = vmul.f32 1.0, %v408
      %v410 = vrcp.pop %v393
      %v411 = vmul.f32 1.0, %v410
      %v412 = vrcp.pop %v394
      %v413 = vmul.f32 1.0, %v412
      %v414 = vrcp.pop %v395
      %v415 = vmul.f32 1.0, %v414
      %v416 = vrcp.pop %v396
      %v417 = vmul.f32 1.0, %v416
      %v418 = vrcp.pop %v397
      %v419 = vmul.f32 1.0, %v418
      %v420 = vrcp.pop %v398
      %v421 = vmul.f32 1.0, %v420
      %v422 = vrcp.pop %v399
      %v423 = vmul.f32 1.0, %v422
      %424 = vst [vmem:[%s203] sm:$0xf0] %v401
      %425 = vst [vmem:[%s203 + $0x8] sm:$0xf0] %v403
      %426 = vst [vmem:[%s203 + $0x10] sm:$0x1] %v405
      %427 = vst [vmem:[%s203 + $0x18] sm:$0x1] %v407
      %428 = vst [vmem:[%s203 + $0x20] sm:$0xf0] %v409
      %429 = vst [vmem:[%s203 + $0x28] sm:$0xf0] %v411
      %430 = vst [vmem:[%s203 + $0x30] sm:$0x1] %v413
      %431 = vst [vmem:[%s203 + $0x38] sm:$0x1] %v415
      %432 = vst [vmem:[%s203 + $0x40] sm:$0xf0] %v417
      %433 = vst [vmem:[%s203 + $0x48] sm:$0xf0] %v419
      %434 = vst [vmem:[%s203 + $0x50] sm:$0x1] %v421
      %435 = vst [vmem:[%s203 + $0x58] sm:$0x1] %v423
      %s436 = smul.u32 2, %s18
      %p437 = scmp.lt.s32.totalorder %s17, 1
      %s438 = scalar_select %p437, %s17, 1
      %p439 = scmp.lt.s32.totalorder %s436, 1
      %s440 = scalar_select %p439, %s436, 1
      %s441 = smul.addr %s438, 12
      %s442 = sadd.s32 %s440, %s441
      %s443 = smul.addr %s442, 8
      %s444 = scalar_lea.vmem %s2, %s443
      // Predicated region
      $region29: #{tpu_custom_call.1} parent=27 // pred_check
        %p445 = pneg %p99
      $region30: #{tpu_custom_call.1} parent=27 // pred_check_branch
        %447 = sbr.rel (%p445) target = $region32
      $region31: #{tpu_custom_call.1} parent=27 // pred_region
        %s448 = smul.u32 2, %s18
      $region32: #{tpu_custom_call.1} parent=27 // pred_fallthru
        _
    $region28: #{tpu_custom_call.1} parent=5 // pred_fallthru
      _
    %p449 = scmp.le.s32.totalorder 2, %s8
    // Predicated region
    $region33: #{tpu_custom_call.1} parent=5 // pred_check
      %p450 = pneg %p449
    $region34: #{tpu_custom_call.1} parent=5 // pred_check_branch
      %452 = sbr.rel (%p450) target = $region36
    $region35: #{tpu_custom_call.1} parent=5 // pred_region
      %s453 = ssub.s32 %s8, 2
      // Predicated region
      $region37: #{tpu_custom_call.1} parent=35 // pred_check
        %p454 = pneg %p105
      $region38: #{tpu_custom_call.1} parent=35 // pred_check_branch
        %456 = sbr.rel (%p454) target = $region40
      $region39: #{tpu_custom_call.1} parent=35 // pred_region
        %s457 = smul.u32 2, %s20
        %p458 = scmp.lt.s32.totalorder %s19, 1
        %s459 = scalar_select %p458, %s19, 1
        %p460 = scmp.lt.s32.totalorder %s457, 1
        %s461 = scalar_select %p460, %s457, 1
        %s462 = smul.addr %s459, 12
        %s463 = sadd.s32 %s461, %s462
        %s464 = smul.addr %s463, 8
        %s465 = scalar_lea.vmem %s2, %s464
      $region40: #{tpu_custom_call.1} parent=35 // pred_fallthru
        _
    $region36: #{tpu_custom_call.1} parent=5 // pred_fallthru
      _
  $region6: #{tpu_custom_call.1} parent=0 // loop_footer
    %s12 = sadd.s32 1, %s8
  $region7: #{tpu_custom_call.1} parent=0 // loop_footer_branch
    %7 = sbr.rel target = $region3
  $region8: #{tpu_custom_call.1} parent=0 // loop_exit
    _

</llo_original>
